<compile_context>
chip_gen: v7x
topology: tpu7x:2x2x1
jax: 0.10.0
libtpu: 0.0.40
codegen_flags: <defaults>
</compile_context>

<pallas_src>
import math

import jax
import jax.numpy as jnp
from jax.experimental import pallas as pl
from jax.experimental.pallas import tpu as pltpu


def _round_up(a, m):
    return (a + m - 1) // m * m


def _state_to_img_kernel(x_ref, w1_ref, b1_ref, w2_ref, b2_ref,
                         w3_ref, b3_ref, wo_ref, bo_ref, out_ref):
    x = x_ref[...]                                               # (tb, 2) f32
    # fc1: K=2 -> two broadcast FMAs on the VPU.
    h = jnp.tanh(x[:, 0:1] * w1_ref[0:1, :]
                 + x[:, 1:2] * w1_ref[1:2, :] + b1_ref[...])     # (tb, 32)
    h = jnp.tanh(jnp.dot(h, w2_ref[...],
                         preferred_element_type=jnp.float32) + b2_ref[...])   # (tb, 128)
    h = jnp.tanh(jnp.dot(h, w3_ref[...],
                         preferred_element_type=jnp.float32) + b3_ref[...])   # (tb, 256)
    # Dominant matmul: bf16 operands, f32 accumulation (bf16-native MXU).
    logits = jnp.dot(h.astype(jnp.bfloat16), wo_ref[...],
                     preferred_element_type=jnp.float32) + bo_ref[...]
    # sigmoid(x) == 0.5 * tanh(0.5 * x) + 0.5  -> single EUP op per element.
    out_ref[...] = (0.5 * jnp.tanh(0.5 * logits) + 0.5).astype(out_ref.dtype)


def prepare_params(params, width, height, *, tn=None):
    """One-time conversion of PyTorch-style (out, in) params into kernel layout.

    Hoisted out of the per-call path: weights transposed to (in, out), the big
    fc_out weight cast to bf16 AND padded to a multiple of the output tile tn,
    biases reshaped to (1, out) rows.
    """
    (w1, b1), (w2, b2), (w3, b3), (wo, bo) = params
    out_dim = width * height
    if tn is None:
        # Move >= ~2-4 MB per grid step, but never pad tiny images up to 2048.
        tn = min(2048, _round_up(out_dim, 128))
    assert tn % 128 == 0, "tn must be a multiple of the 128-lane tile"
    n_pad = _round_up(out_dim, tn)

    wot = wo.T.astype(jnp.bfloat16)
    bor = bo.reshape(1, -1).astype(jnp.float32)
    if n_pad != out_dim:
        wot = jnp.pad(wot, ((0, 0), (0, n_pad - out_dim)))
        bor = jnp.pad(bor, ((0, 0), (0, n_pad - out_dim)))

    return {
        "w1t": w1.T.astype(jnp.float32), "b1r": b1.reshape(1, -1).astype(jnp.float32),
        "w2t": w2.T.astype(jnp.float32), "b2r": b2.reshape(1, -1).astype(jnp.float32),
        "w3t": w3.T.astype(jnp.float32), "b3r": b3.reshape(1, -1).astype(jnp.float32),
        "wot": wot, "bor": bor,
        "width": width, "height": height,
        "out_dim": out_dim, "tn": tn, "n_pad": n_pad,
    }


def state_to_img_forward(x, prepared, *, tb=None, out_dtype=jnp.float32):
    """x: (B, 2) -> (B, width, height)."""
    width, height = prepared["width"], prepared["height"]
    out_dim, tn, n_pad = prepared["out_dim"], prepared["tn"], prepared["n_pad"]
    w1t, b1r = prepared["w1t"], prepared["b1r"]
    w2t, b2r = prepared["w2t"], prepared["b2r"]
    w3t, b3r = prepared["w3t"], prepared["b3r"]
    wot, bor = prepared["wot"], prepared["bor"]

    x = x.astype(jnp.float32)
    B = x.shape[0]

    if tb is None:
        tb = min(512, _round_up(B, 8))
        # v7x megacore: prefer >= 2 batch tiles so both TensorCores get work
        # even when there is a single N tile.  With the fc_out weight indexed
        # only by the outer N axis this costs no extra weight HBM traffic.
        if B >= 16 and _round_up(B, tb) // tb < 2:
            tb = _round_up((B + 1) // 2, 8)
    assert tb % 8 == 0, "tb must be a multiple of the 8-sublane tile"
    b_pad = _round_up(B, tb)
    if b_pad != B:
        x = jnp.pad(x, ((0, b_pad - B), (0, 0)))

    grid = (n_pad // tn, b_pad // tb)          # N outer, batch inner

    def const_spec(shape):
        # Constant index_map -> block resident in VMEM, DMA'd once.
        return pl.BlockSpec(shape, lambda n, b: (0, 0))

    steps = grid[0] * grid[1]
    out_itemsize = jnp.dtype(out_dtype).itemsize
    trunk_flops_per_row = 2 * (2 * 32 + 32 * 128 + 128 * 256)
    flops = int(steps * tb * trunk_flops_per_row + 2 * b_pad * 256 * n_pad)
    transcendentals = int(steps * tb * (32 + 128 + 256) + b_pad * n_pad)
    bytes_accessed = int(
        grid[0] * b_pad * 2 * 4                                   # x, once per N tile
        + (w1t.size + w2t.size + w3t.size
           + b1r.size + b2r.size + b3r.size) * 4                  # trunk params, once
        + wot.size * 2 + bor.size * 4                             # fc_out weight, once
        + b_pad * n_pad * out_itemsize)                           # output, once

    # Double-buffered VMEM working set; only raise the scoped limit when
    # user-chosen tiles exceed the v5e 16 MiB default (defaults ~10.5 MiB).
    vmem_bytes = (2 * (tb * 2 * 4 + 256 * tn * 2 + tn * 4 + tb * tn * out_itemsize)
                  + 2 * (w1t.size + w2t.size + w3t.size
                         + b1r.size + b2r.size + b3r.size) * 4)
    compiler_kwargs = dict(dimension_semantics=("parallel", "parallel"))
    if vmem_bytes > 12 * 1024 * 1024:
        compiler_kwargs["vmem_limit_bytes"] = int(vmem_bytes * 1.5)

    flat = pl.pallas_call(
        _state_to_img_kernel,
        out_shape=jax.ShapeDtypeStruct((b_pad, n_pad), out_dtype),
        grid=grid,
        in_specs=[
            pl.BlockSpec((tb, 2), lambda n, b: (b, 0)),       # x tile (tiny, streams)
            const_spec((2, 32)), const_spec((1, 32)),         # fc1
            const_spec((32, 128)), const_spec((1, 128)),      # fc2
            const_spec((128, 256)), const_spec((1, 256)),     # fc3
            pl.BlockSpec((256, tn), lambda n, b: (0, n)),     # fc_out W: outer axis only
            pl.BlockSpec((1, tn), lambda n, b: (0, n)),       # fc_out bias
        ],
        out_specs=pl.BlockSpec((tb, tn), lambda n, b: (b, n)),
        compiler_params=pltpu.CompilerParams(**compiler_kwargs),
        cost_estimate=pl.CostEstimate(flops=flops,
                                      transcendentals=transcendentals,
                                      bytes_accessed=bytes_accessed),
    )(x, w1t, b1r, w2t, b2r, w3t, b3r, wot, bor)

    # Drop padding, then match torch.reshape(x, (-1, width, height)).
    return flat[:B, :out_dim].reshape(B, width, height)


def init_params(key, width, height):
    """PyTorch-style (out, in) Linear params, U(-1/sqrt(fan_in), +1/sqrt(fan_in))."""
    dims = [(2, 32), (32, 128), (128, 256), (256, width * height)]
    params = []
    for fan_in, fan_out in dims:
        key, kw, kb = jax.random.split(key, 3)
        bound = 1.0 / math.sqrt(fan_in)
        w = jax.random.uniform(kw, (fan_out, fan_in), jnp.float32, -bound, bound)
        b = jax.random.uniform(kb, (fan_out,), jnp.float32, -bound, bound)
        params.append((w, b))
    return params


def reference_forward_bf16(x, params, width, height):
    """Mimics the kernel's numerics: f32 trunk, bf16-operand final matmul."""
    (w1, b1), (w2, b2), (w3, b3), (wo, bo) = params
    h = jnp.tanh(x @ w1.T + b1)
    h = jnp.tanh(h @ w2.T + b2)
    h = jnp.tanh(h @ w3.T + b3)
    logits = jnp.dot(h.astype(jnp.bfloat16), wo.T.astype(jnp.bfloat16),
                     preferred_element_type=jnp.float32) + bo
    return jax.nn.sigmoid(logits).reshape(-1, width, height)


def reference_forward_f32(x, params, width, height):
    (w1, b1), (w2, b2), (w3, b3), (wo, bo) = params
    h = jnp.tanh(x @ w1.T + b1)
    h = jnp.tanh(h @ w2.T + b2)
    h = jnp.tanh(h @ w3.T + b3)
    return jax.nn.sigmoid(h @ wo.T + bo).reshape(-1, width, height)


if __name__ == "__main__":
    # Small shapes consistent with the module: out_dim = 600 is NOT a multiple
    # of 128 and batch = 20 is NOT a multiple of the batch tile, so both
    # padding paths are exercised.
    width, height = 20, 30
    batch = 20

    key = jax.random.PRNGKey(0)
    key, kx = jax.random.split(key)
    x = jax.random.normal(kx, (batch, 2), jnp.float32)
    params = init_params(key, width, height)

    ref_bf16 = reference_forward_bf16(x, params, width, height)
    ref_f32 = reference_forward_f32(x, params, width, height)

    # Default tiling: tn = 640 (single N tile), two 16-row batch tiles.
    prepared = prepare_params(params, width, height)
    out = jax.block_until_ready(state_to_img_forward(x, prepared))
    assert out.shape == (batch, width, height), out.shape
    err_bf16 = float(jnp.max(jnp.abs(out - ref_bf16)))
    err_f32 = float(jnp.max(jnp.abs(out - ref_f32)))
    assert err_bf16 < 1e-3, err_bf16   # vs reference with the same bf16 matmul
    assert err_f32 < 5e-2, err_f32     # loose sanity check vs pure-f32 math

    # Small explicit tiles: exercises a full (3, 3) grid -> fc_out weight tile
    # residency across batch tiles, N padding (600 -> 768) and batch padding.
    prepared_s = prepare_params(params, width, height, tn=256)
    out_s = jax.block_until_ready(state_to_img_forward(x, prepared_s, tb=8))
    assert out_s.shape == (batch, width, height), out_s.shape
    err_s = float(jnp.max(jnp.abs(out_s - ref_bf16)))
    assert err_s < 1e-3, err_s

    print("KERNEL_OK")
</pallas_src>

<mosaic_0001>
module attributes {stable_mosaic.version = 11 : i64} {
  func.func @_state_to_img_kernel(%arg0: i32, %arg1: i32, %arg2: memref<16x2xf32, #tpu.memory_space<vmem>>, %arg3: memref<2x32xf32, #tpu.memory_space<vmem>>, %arg4: memref<1x32xf32, #tpu.memory_space<vmem>>, %arg5: memref<32x128xf32, #tpu.memory_space<vmem>>, %arg6: memref<1x128xf32, #tpu.memory_space<vmem>>, %arg7: memref<128x256xf32, #tpu.memory_space<vmem>>, %arg8: memref<1x256xf32, #tpu.memory_space<vmem>>, %arg9: memref<256x640xbf16, #tpu.memory_space<vmem>>, %arg10: memref<1x640xf32, #tpu.memory_space<vmem>>, %arg11: memref<16x640xf32, #tpu.memory_space<vmem>>) attributes {dimension_semantics = [#tpu.dimension_semantics<parallel>, #tpu.dimension_semantics<parallel>], iteration_bounds = array<i64: 1, 2>, scalar_prefetch = 0 : i64, scratch_operands = 0 : i64, tpu.core_type = #tpu.core_type<tc>, window_params = [{transform_indices = @transform_0, window_bounds = array<i64: 16, 2>}, {pipeline_mode = #tpu.pipeline_mode<synchronous>, transform_indices = @transform_1, window_bounds = array<i64: 2, 32>}, {pipeline_mode = #tpu.pipeline_mode<synchronous>, transform_indices = @transform_2, window_bounds = array<i64: 1, 32>}, {pipeline_mode = #tpu.pipeline_mode<synchronous>, transform_indices = @transform_3, window_bounds = array<i64: 32, 128>}, {pipeline_mode = #tpu.pipeline_mode<synchronous>, transform_indices = @transform_4, window_bounds = array<i64: 1, 128>}, {pipeline_mode = #tpu.pipeline_mode<synchronous>, transform_indices = @transform_5, window_bounds = array<i64: 128, 256>}, {pipeline_mode = #tpu.pipeline_mode<synchronous>, transform_indices = @transform_6, window_bounds = array<i64: 1, 256>}, {transform_indices = @transform_7, window_bounds = array<i64: 256, 640>}, {transform_indices = @transform_8, window_bounds = array<i64: 1, 640>}, {transform_indices = @transform_9, window_bounds = array<i64: 16, 640>}]} {
    %c0 = arith.constant 0 : index
    %c0_0 = arith.constant 0 : index
    %0 = vector.load %arg2[%c0, %c0_0] : memref<16x2xf32, #tpu.memory_space<vmem>>, vector<16x2xf32>
    %1 = vector.extract_strided_slice %0 {offsets = [0, 0], sizes = [16, 1], strides = [1, 1]} : vector<16x2xf32> to vector<16x1xf32>
    %c0_1 = arith.constant 0 : index
    %c0_2 = arith.constant 0 : index
    %2 = vector.load %arg3[%c0_1, %c0_2] : memref<2x32xf32, #tpu.memory_space<vmem>>, vector<1x32xf32>
    %3 = vector.broadcast %1 : vector<16x1xf32> to vector<16x32xf32>
    %4 = vector.broadcast %2 : vector<1x32xf32> to vector<16x32xf32>
    %5 = arith.mulf %3, %4 : vector<16x32xf32>
    %6 = vector.extract_strided_slice %0 {offsets = [0, 1], sizes = [16, 1], strides = [1, 1]} : vector<16x2xf32> to vector<16x1xf32>
    %c1 = arith.constant 1 : index
    %c0_3 = arith.constant 0 : index
    %7 = vector.load %arg3[%c1, %c0_3] : memref<2x32xf32, #tpu.memory_space<vmem>>, vector<1x32xf32>
    %8 = vector.broadcast %6 : vector<16x1xf32> to vector<16x32xf32>
    %9 = vector.broadcast %7 : vector<1x32xf32> to vector<16x32xf32>
    %10 = arith.mulf %8, %9 : vector<16x32xf32>
    %11 = arith.addf %5, %10 : vector<16x32xf32>
    %c0_4 = arith.constant 0 : index
    %c0_5 = arith.constant 0 : index
    %12 = vector.load %arg4[%c0_4, %c0_5] : memref<1x32xf32, #tpu.memory_space<vmem>>, vector<1x32xf32>
    %13 = vector.broadcast %12 : vector<1x32xf32> to vector<16x32xf32>
    %14 = arith.addf %11, %13 : vector<16x32xf32>
    %15 = math.tanh %14 : vector<16x32xf32>
    %c0_6 = arith.constant 0 : index
    %c0_7 = arith.constant 0 : index
    %16 = vector.load %arg5[%c0_6, %c0_7] : memref<32x128xf32, #tpu.memory_space<vmem>>, vector<32x128xf32>
    %cst = arith.constant dense<0.000000e+00> : vector<16x128xf32>
    %17 = tpu.matmul %15, %16, %cst {dimension_numbers = #tpu.dot_dimension_numbers<[1], [0], [0], [1], [0, 0, 1, 1], [], []>} : vector<16x32xf32>, vector<32x128xf32>, vector<16x128xf32> -> vector<16x128xf32>
    %c0_8 = arith.constant 0 : index
    %c0_9 = arith.constant 0 : index
    %18 = vector.load %arg6[%c0_8, %c0_9] : memref<1x128xf32, #tpu.memory_space<vmem>>, vector<1x128xf32>
    %19 = vector.broadcast %18 : vector<1x128xf32> to vector<16x128xf32>
    %20 = arith.addf %17, %19 : vector<16x128xf32>
    %21 = math.tanh %20 : vector<16x128xf32>
    %c0_10 = arith.constant 0 : index
    %c0_11 = arith.constant 0 : index
    %22 = vector.load %arg7[%c0_10, %c0_11] : memref<128x256xf32, #tpu.memory_space<vmem>>, vector<128x256xf32>
    %cst_12 = arith.constant dense<0.000000e+00> : vector<16x256xf32>
    %23 = tpu.matmul %21, %22, %cst_12 {dimension_numbers = #tpu.dot_dimension_numbers<[1], [0], [0], [1], [0, 0, 1, 1], [], []>} : vector<16x128xf32>, vector<128x256xf32>, vector<16x256xf32> -> vector<16x256xf32>
    %c0_13 = arith.constant 0 : index
    %c0_14 = arith.constant 0 : index
    %24 = vector.load %arg8[%c0_13, %c0_14] : memref<1x256xf32, #tpu.memory_space<vmem>>, vector<1x256xf32>
    %25 = vector.broadcast %24 : vector<1x256xf32> to vector<16x256xf32>
    %26 = arith.addf %23, %25 : vector<16x256xf32>
    %27 = math.tanh %26 : vector<16x256xf32>
    %28 = arith.truncf %27 : vector<16x256xf32> to vector<16x256xbf16>
    %c0_15 = arith.constant 0 : index
    %c0_16 = arith.constant 0 : index
    %29 = vector.load %arg9[%c0_15, %c0_16] : memref<256x640xbf16, #tpu.memory_space<vmem>>, vector<256x640xbf16>
    %cst_17 = arith.constant dense<0.000000e+00> : vector<16x640xf32>
    %30 = tpu.matmul %28, %29, %cst_17 {dimension_numbers = #tpu.dot_dimension_numbers<[1], [0], [0], [1], [0, 0, 1, 1], [], []>} : vector<16x256xbf16>, vector<256x640xbf16>, vector<16x640xf32> -> vector<16x640xf32>
    %c0_18 = arith.constant 0 : index
    %c0_19 = arith.constant 0 : index
    %31 = vector.load %arg10[%c0_18, %c0_19] : memref<1x640xf32, #tpu.memory_space<vmem>>, vector<1x640xf32>
    %32 = vector.broadcast %31 : vector<1x640xf32> to vector<16x640xf32>
    %33 = arith.addf %30, %32 : vector<16x640xf32>
    %cst_20 = arith.constant 5.000000e-01 : f32
    %34 = vector.broadcast %cst_20 : f32 to vector<16x640xf32>
    %35 = arith.mulf %34, %33 : vector<16x640xf32>
    %36 = math.tanh %35 : vector<16x640xf32>
    %cst_21 = arith.constant 5.000000e-01 : f32
    %37 = vector.broadcast %cst_21 : f32 to vector<16x640xf32>
    %38 = arith.mulf %37, %36 : vector<16x640xf32>
    %cst_22 = arith.constant 5.000000e-01 : f32
    %39 = vector.broadcast %cst_22 : f32 to vector<16x640xf32>
    %40 = arith.addf %38, %39 : vector<16x640xf32>
    %c0_23 = arith.constant 0 : index
    %c0_24 = arith.constant 0 : index
    %41 = vector.load %arg11[%c0_23, %c0_24] : memref<16x640xf32, #tpu.memory_space<vmem>>, vector<16x640xf32>
    tpu.vector_store %arg11[%c0_23, %c0_24], %40 {strides = array<i32>} : memref<16x640xf32, #tpu.memory_space<vmem>>, vector<16x640xf32>,
    return
  }
  func.func @transform_0(%arg0: i32, %arg1: i32) -> (i32, i32) {
    %c0_i32 = arith.constant 0 : i32
    %c0_i32_0 = arith.constant 0 : i32
    return %arg1, %c0_i32 : i32, i32
  }
  func.func @transform_1(%arg0: i32, %arg1: i32) -> (i32, i32) {
    %c0_i32 = arith.constant 0 : i32
    %c0_i32_0 = arith.constant 0 : i32
    %c0_i32_1 = arith.constant 0 : i32
    return %c0_i32, %c0_i32_0 : i32, i32
  }
  func.func @transform_2(%arg0: i32, %arg1: i32) -> (i32, i32) {
    %c0_i32 = arith.constant 0 : i32
    %c0_i32_0 = arith.constant 0 : i32
    %c0_i32_1 = arith.constant 0 : i32
    return %c0_i32, %c0_i32_0 : i32, i32
  }
  func.func @transform_3(%arg0: i32, %arg1: i32) -> (i32, i32) {
    %c0_i32 = arith.constant 0 : i32
    %c0_i32_0 = arith.constant 0 : i32
    %c0_i32_1 = arith.constant 0 : i32
    return %c0_i32, %c0_i32_0 : i32, i32
  }
  func.func @transform_4(%arg0: i32, %arg1: i32) -> (i32, i32) {
    %c0_i32 = arith.constant 0 : i32
    %c0_i32_0 = arith.constant 0 : i32
    %c0_i32_1 = arith.constant 0 : i32
    return %c0_i32, %c0_i32_0 : i32, i32
  }
  func.func @transform_5(%arg0: i32, %arg1: i32) -> (i32, i32) {
    %c0_i32 = arith.constant 0 : i32
    %c0_i32_0 = arith.constant 0 : i32
    %c0_i32_1 = arith.constant 0 : i32
    return %c0_i32, %c0_i32_0 : i32, i32
  }
  func.func @transform_6(%arg0: i32, %arg1: i32) -> (i32, i32) {
    %c0_i32 = arith.constant 0 : i32
    %c0_i32_0 = arith.constant 0 : i32
    %c0_i32_1 = arith.constant 0 : i32
    return %c0_i32, %c0_i32_0 : i32, i32
  }
  func.func @transform_7(%arg0: i32, %arg1: i32) -> (i32, i32) {
    %c0_i32 = arith.constant 0 : i32
    %c0_i32_0 = arith.constant 0 : i32
    return %c0_i32, %arg0 : i32, i32
  }
  func.func @transform_8(%arg0: i32, %arg1: i32) -> (i32, i32) {
    %c0_i32 = arith.constant 0 : i32
    %c0_i32_0 = arith.constant 0 : i32
    return %c0_i32, %arg0 : i32, i32
  }
  func.func @transform_9(%arg0: i32, %arg1: i32) -> (i32, i32) {
    %c0_i32 = arith.constant 0 : i32
    return %arg1, %arg0 : i32, i32
  }
}

</mosaic_0001>

<llo_original>
// kernel: tpu_custom_call.1
$region0: #{tpu_custom_call.1}
  #allocation0 [shape = 'u32[]', space=smem, size = 0x4, offset = 0x4, fixed_abs, tag = 'smem constant byte address 0x4 - core index']
  #allocation1 [shape = 'u32[144,128]{1,0:T(1,128)}', space=vmem, size = 0x12000, scoped, tag = 'internal scratch']
  %s0 = inlined_call_operand.vmem [shape: f32[32,2], index: 0, kind: input, shape index: {}]
  %s1 = inlined_call_operand.vmem [shape: f32[2,32], index: 1, kind: input, shape index: {}]
  %s2 = inlined_call_operand.vmem [shape: f32[1,32], index: 2, kind: input, shape index: {}]
  %s3 = inlined_call_operand.vmem [shape: f32[32,128], index: 3, kind: input, shape index: {}]
  %s4 = inlined_call_operand.vmem [shape: f32[1,128], index: 4, kind: input, shape index: {}]
  %s5 = inlined_call_operand.hbm [shape: f32[128,256], index: 5, kind: input, shape index: {}]
  %s6 = inlined_call_operand.vmem [shape: f32[1,256], index: 6, kind: input, shape index: {}]
  %s7 = inlined_call_operand.hbm [shape: bf16[256,640], index: 7, kind: input, shape index: {}]
  %s8 = inlined_call_operand.vmem [shape: f32[1,640], index: 8, kind: input, shape index: {}]
  %s9 = inlined_call_operand.hbm [shape: f32[32,640], index: 9, kind: output, shape index: {}]
  %s10 = sld [smem:[#allocation0]]
  $region77: #{tpu_custom_call.1} parent=0
    _
  %s12 = ssub.s32 1, %s10
  %s13 = scalar_select 0, %s12, %s10
  $region1: #{tpu_custom_call.1} parent=0
    #allocation2 [shape = 'u8[131072]{0}', space=vmem, size = 0x20000, scoped, tag = 'input window, operand 5, single buffered']
    #allocation3 [shape = 's32[2]{0}', space=sflag, size = 0x8, scoped, tag = 'scoped memory for tpu_custom_call.1']
    #allocation4 [shape = 's32[2]{0}', space=sflag, size = 0x8, scoped, tag = 'scoped memory for tpu_custom_call.1']
    #allocation5 [shape = 'u8[327680]{0}', space=vmem, size = 0x50000, scoped, tag = 'input window, operand 7, single buffered']
    #allocation6 [shape = 's32[1]{0}', space=sflag, size = 0x4, scoped, tag = 'scoped memory for tpu_custom_call.1']
    #allocation7 [shape = 'u8[81920]{0}', space=vmem, size = 0x14000, scoped, tag = 'output window, operand 0']
    %14 = vsyncpa [#allocation3], 0
    %15 = vsyncpa [#allocation6], 0
    %16 = vsyncpa [#allocation4], 0
    %s17 = scalar_lea.sflag [#allocation4], 1
    %18 = vsyncpa %s17, 0
    loop: start=0, step=1, limit=4
    $region2: #{tpu_custom_call.1} parent=1 // loop_pre_header
      _
    $region3: #{tpu_custom_call.1} parent=1 // loop_header
      %s20 = sphi 0, %s24
      %p21 = scmp.ge.s32.totalorder %s20, 4
      %s27 = sphi 0, %s39
      %s28 = sphi 0, %s35
      %s29 = sphi 0, %s27
      %s30 = sphi 0, %s28
      %s31 = sphi 0, %s29
      %s32 = sphi 0, %s30
      %s42 = sphi 0, %s44
      %s45 = sphi 0, %s42
      %s46 = sphi 0, %s45
      %s62 = sphi 0, %s46
      %s66 = sphi 0, %s66
      %s68 = sphi 0, %s66
      %s69 = sphi 0, %s68
      %s83 = sphi 0, %s69
      %s87 = sphi 0, %s87
      %s89 = sphi 0, %s87
      %s90 = sphi 0, %s89
      %s104 = sphi 0, %s90
      %s108 = sphi 0, %s108
      %s110 = sphi 0, %s108
      %s111 = sphi 0, %s110
      %s125 = sphi 0, %s111
      %s129 = sphi 0, %s129
      %s131 = sphi 0, %s129
      %s132 = sphi 0, %s131
      %s146 = sphi 0, %s132
      %s150 = sphi 0, %s150
      %s152 = sphi 0, %s150
      %s153 = sphi 0, %s152
      %s167 = sphi 0, %s153
      %s171 = sphi 0, %s171
      %s173 = sphi 0, %s171
      %s174 = sphi 0, %s173
      %s188 = sphi 0, %s174
      %s194 = sphi 0, %s196
      %s197 = sphi 0, %s194
      %s198 = sphi 0, %s197
      %s214 = sphi 0, %s198
      %s220 = sphi 0, %s222
      %s223 = sphi 0, %s220
      %s224 = sphi 0, %s223
      %s240 = sphi 0, %s224
      %s248 = sphi 0, %s250
      %s251 = sphi 0, %s248
      %s252 = sphi 0, %s251
      %s268 = sphi 0, %s252
    $region4: #{tpu_custom_call.1} parent=1 // loop_header_branch
      %23 = sbr.rel (%p21) target = $region8
    $region5: #{tpu_custom_call.1} parent=1 // loop_body
      %s25 = ssub.s32 %s20, 1
      %s26 = ssub.s32 %s20, 2
      %s33 = sadd.s32 1, %s28
      %p34 = scmp.ge.s32.totalorder %s33, 2
      %s35 = scalar_select %p34, 0, %s33
      %s36 = sadd.s32 1, %s27
      %s37 = scalar_select %p34, %s36, %s27
      %p38 = scmp.ge.s32.totalorder %s37, 1
      %s39 = scalar_select %p38, 0, %s37
      %s40 = ssub.s32 %s28, %s35
      %p41 = scmp.eq.s32.totalorder %s40, 0
      %s43 = sadd.s32 %s42, 1
      %s44 = scalar_select %p41, %s42, %s43
      %p47 = pneg %p41
      %p48 = scmp.eq.s32.totalorder %s20, 1
      %p49 = por %p47, %p48
      %p50 = scmp.ne.s32.totalorder %s42, %s45
      %p51 = scmp.eq.s32.totalorder %s20, 0
      %p52 = por %p50, %p51
      %p53 = scmp.ne.s32.totalorder %s42, %s45
      %p54 = scmp.eq.s32.totalorder %s25, 1
      %p55 = por %p53, %p54
      %p56 = scmp.ne.s32.totalorder %s45, %s46
      %p57 = scmp.eq.s32.totalorder %s25, 0
      %p58 = por %p56, %p57
      %p59 = scmp.ne.s32.totalorder %s45, %s46
      %p60 = scmp.eq.s32.totalorder %s26, 1
      %p61 = por %p59, %p60
      %p63 = scmp.ne.s32.totalorder %s46, %s62
      %p64 = scmp.eq.s32.totalorder %s26, 0
      %p65 = por %p63, %p64
      %s67 = sadd.s32 %s66, 1
      %p70 = scmp.eq.s32.totalorder %s20, 1
      %p71 = scmp.ne.s32.totalorder %s66, %s68
      %p72 = scmp.eq.s32.totalorder %s20, 0
      %p73 = por %p71, %p72
      %p74 = scmp.ne.s32.totalorder %s66, %s68
      %p75 = scmp.eq.s32.totalorder %s25, 1
      %p76 = por %p74, %p75
      %p77 = scmp.ne.s32.totalorder %s68, %s69
      %p78 = scmp.eq.s32.totalorder %s25, 0
      %p79 = por %p77, %p78
      %p80 = scmp.ne.s32.totalorder %s68, %s69
      %p81 = scmp.eq.s32.totalorder %s26, 1
      %p82 = por %p80, %p81
      %p84 = scmp.ne.s32.totalorder %s69, %s83
      %p85 = scmp.eq.s32.totalorder %s26, 0
      %p86 = por %p84, %p85
      %s88 = sadd.s32 %s87, 1
      %p91 = scmp.eq.s32.totalorder %s20, 1
      %p92 = scmp.ne.s32.totalorder %s87, %s89
      %p93 = scmp.eq.s32.totalorder %s20, 0
      %p94 = por %p92, %p93
      %p95 = scmp.ne.s32.totalorder %s87, %s89
      %p96 = scmp.eq.s32.totalorder %s25, 1
      %p97 = por %p95, %p96
      %p98 = scmp.ne.s32.totalorder %s89, %s90
      %p99 = scmp.eq.s32.totalorder %s25, 0
      %p100 = por %p98, %p99
      %p101 = scmp.ne.s32.totalorder %s89, %s90
      %p102 = scmp.eq.s32.totalorder %s26, 1
      %p103 = por %p101, %p102
      %p105 = scmp.ne.s32.totalorder %s90, %s104
      %p106 = scmp.eq.s32.totalorder %s26, 0
      %p107 = por %p105, %p106
      %s109 = sadd.s32 %s108, 1
      %p112 = scmp.eq.s32.totalorder %s20, 1
      %p113 = scmp.ne.s32.totalorder %s108, %s110
      %p114 = scmp.eq.s32.totalorder %s20, 0
      %p115 = por %p113, %p114
      %p116 = scmp.ne.s32.totalorder %s108, %s110
      %p117 = scmp.eq.s32.totalorder %s25, 1
      %p118 = por %p116, %p117
      %p119 = scmp.ne.s32.totalorder %s110, %s111
      %p120 = scmp.eq.s32.totalorder %s25, 0
      %p121 = por %p119, %p120
      %p122 = scmp.ne.s32.totalorder %s110, %s111
      %p123 = scmp.eq.s32.totalorder %s26, 1
      %p124 = por %p122, %p123
      %p126 = scmp.ne.s32.totalorder %s111, %s125
      %p127 = scmp.eq.s32.totalorder %s26, 0
      %p128 = por %p126, %p127
      %s130 = sadd.s32 %s129, 1
      %p133 = scmp.eq.s32.totalorder %s20, 1
      %p134 = scmp.ne.s32.totalorder %s129, %s131
      %p135 = scmp.eq.s32.totalorder %s20, 0
      %p136 = por %p134, %p135
      %p137 = scmp.ne.s32.totalorder %s129, %s131
      %p138 = scmp.eq.s32.totalorder %s25, 1
      %p139 = por %p137, %p138
      %p140 = scmp.ne.s32.totalorder %s131, %s132
      %p141 = scmp.eq.s32.totalorder %s25, 0
      %p142 = por %p140, %p141
      %p143 = scmp.ne.s32.totalorder %s131, %s132
      %p144 = scmp.eq.s32.totalorder %s26, 1
      %p145 = por %p143, %p144
      %p147 = scmp.ne.s32.totalorder %s132, %s146
      %p148 = scmp.eq.s32.totalorder %s26, 0
      %p149 = por %p147, %p148
      %s151 = sadd.s32 %s150, 1
      %p154 = scmp.eq.s32.totalorder %s20, 1
      %p155 = scmp.ne.s32.totalorder %s150, %s152
      %p156 = scmp.eq.s32.totalorder %s20, 0
      %p157 = por %p155, %p156
      %p158 = scmp.ne.s32.totalorder %s150, %s152
      %p159 = scmp.eq.s32.totalorder %s25, 1
      %p160 = por %p158, %p159
      %p161 = scmp.ne.s32.totalorder %s152, %s153
      %p162 = scmp.eq.s32.totalorder %s25, 0
      %p163 = por %p161, %p162
      %p164 = scmp.ne.s32.totalorder %s152, %s153
      %p165 = scmp.eq.s32.totalorder %s26, 1
      %p166 = por %p164, %p165
      %p168 = scmp.ne.s32.totalorder %s153, %s167
      %p169 = scmp.eq.s32.totalorder %s26, 0
      %p170 = por %p168, %p169
      %s172 = sadd.s32 %s171, 1
      %p175 = scmp.eq.s32.totalorder %s20, 1
      %p176 = scmp.ne.s32.totalorder %s171, %s173
      %p177 = scmp.eq.s32.totalorder %s20, 0
      %p178 = por %p176, %p177
      %p179 = scmp.ne.s32.totalorder %s171, %s173
      %p180 = scmp.eq.s32.totalorder %s25, 1
      %p181 = por %p179, %p180
      %p182 = scmp.ne.s32.totalorder %s173, %s174
      %p183 = scmp.eq.s32.totalorder %s25, 0
      %p184 = por %p182, %p183
      %p185 = scmp.ne.s32.totalorder %s173, %s174
      %p186 = scmp.eq.s32.totalorder %s26, 1
      %p187 = por %p185, %p186
      %p189 = scmp.ne.s32.totalorder %s174, %s188
      %p190 = scmp.eq.s32.totalorder %s26, 0
      %p191 = por %p189, %p190
      %s192 = ssub.s32 %s27, %s39
      %p193 = scmp.eq.s32.totalorder %s192, 0
      %s195 = sadd.s32 %s194, 1
      %s196 = scalar_select %p193, %s194, %s195
      %p199 = pneg %p193
      %p200 = scmp.eq.s32.totalorder %s20, 1
      %p201 = por %p199, %p200
      %p202 = scmp.ne.s32.totalorder %s194, %s197
      %p203 = scmp.eq.s32.totalorder %s20, 0
      %p204 = por %p202, %p203
      %p205 = scmp.ne.s32.totalorder %s194, %s197
      %p206 = scmp.eq.s32.totalorder %s25, 1
      %p207 = por %p205, %p206
      %p208 = scmp.ne.s32.totalorder %s197, %s198
      %p209 = scmp.eq.s32.totalorder %s25, 0
      %p210 = por %p208, %p209
      %p211 = scmp.ne.s32.totalorder %s197, %s198
      %p212 = scmp.eq.s32.totalorder %s26, 1
      %p213 = por %p211, %p212
      %p215 = scmp.ne.s32.totalorder %s198, %s214
      %p216 = scmp.eq.s32.totalorder %s26, 0
      %p217 = por %p215, %p216
      %s218 = ssub.s32 %s27, %s39
      %p219 = scmp.eq.s32.totalorder %s218, 0
      %s221 = sadd.s32 %s220, 1
      %s222 = scalar_select %p219, %s220, %s221
      %p225 = pneg %p219
      %p226 = scmp.eq.s32.totalorder %s20, 1
      %p227 = por %p225, %p226
      %p228 = scmp.ne.s32.totalorder %s220, %s223
      %p229 = scmp.eq.s32.totalorder %s20, 0
      %p230 = por %p228, %p229
      %p231 = scmp.ne.s32.totalorder %s220, %s223
      %p232 = scmp.eq.s32.totalorder %s25, 1
      %p233 = por %p231, %p232
      %p234 = scmp.ne.s32.totalorder %s223, %s224
      %p235 = scmp.eq.s32.totalorder %s25, 0
      %p236 = por %p234, %p235
      %p237 = scmp.ne.s32.totalorder %s223, %s224
      %p238 = scmp.eq.s32.totalorder %s26, 1
      %p239 = por %p237, %p238
      %p241 = scmp.ne.s32.totalorder %s224, %s240
      %p242 = scmp.eq.s32.totalorder %s26, 0
      %p243 = por %p241, %p242
      %s244 = ssub.s32 %s28, %s35
      %s245 = ssub.s32 %s27, %s39
      %s246 = sor.u32 %s244, %s245
      %p247 = scmp.eq.s32.totalorder %s246, 0
      %s249 = sadd.s32 %s248, 1
      %s250 = scalar_select %p247, %s248, %s249
      %p253 = pneg %p247
      %p254 = scmp.eq.s32.totalorder %s20, 1
      %p255 = por %p253, %p254
      %p256 = scmp.ne.s32.totalorder %s248, %s251
      %p257 = scmp.eq.s32.totalorder %s20, 0
      %p258 = por %p256, %p257
      %p259 = scmp.ne.s32.totalorder %s248, %s251
      %p260 = scmp.eq.s32.totalorder %s25, 1
      %p261 = por %p259, %p260
      %p262 = scmp.ne.s32.totalorder %s251, %s252
      %p263 = scmp.eq.s32.totalorder %s25, 0
      %p264 = por %p262, %p263
      %p265 = scmp.ne.s32.totalorder %s251, %s252
      %p266 = scmp.eq.s32.totalorder %s26, 1
      %p267 = por %p265, %p266
      %p269 = scmp.ne.s32.totalorder %s252, %s268
      %p270 = scmp.eq.s32.totalorder %s26, 0
      %p271 = por %p269, %p270
      %p272 = scmp.le.s32.totalorder 1, %s20
      %p273 = scmp.lt.s32.totalorder %s20, 3
      %p274 = pnand %p272, %p273
      %p275 = pneg %p274
      // Predicated region
      $region9: #{tpu_custom_call.1} parent=5 // pred_check
        _
      $region10: #{tpu_custom_call.1} parent=5 // pred_check_branch
        %277 = sbr.rel (%p274) target = $region12
      $region11: #{tpu_custom_call.1} parent=5 // pred_region
        %s278 = ssub.s32 %s20, 1
        // Predicated region
        $region13: #{tpu_custom_call.1} parent=11 // pred_check
          %p279 = pneg %p79
        $region14: #{tpu_custom_call.1} parent=11 // pred_check_branch
          %281 = sbr.rel (%p279) target = $region16
        $region15: #{tpu_custom_call.1} parent=11 // pred_region
          _
        $region16: #{tpu_custom_call.1} parent=11 // pred_fallthru
          _
        // Predicated region
        $region17: #{tpu_custom_call.1} parent=11 // pred_check
          %p282 = pneg %p100
        $region18: #{tpu_custom_call.1} parent=11 // pred_check_branch
          %284 = sbr.rel (%p282) target = $region20
        $region19: #{tpu_custom_call.1} parent=11 // pred_region
          _
        $region20: #{tpu_custom_call.1} parent=11 // pred_fallthru
          _
        // Predicated region
        $region21: #{tpu_custom_call.1} parent=11 // pred_check
          %p285 = pneg %p121
        $region22: #{tpu_custom_call.1} parent=11 // pred_check_branch
          %287 = sbr.rel (%p285) target = $region24
        $region23: #{tpu_custom_call.1} parent=11 // pred_region
          _
        $region24: #{tpu_custom_call.1} parent=11 // pred_fallthru
          _
        // Predicated region
        $region25: #{tpu_custom_call.1} parent=11 // pred_check
          %p288 = pneg %p142
        $region26: #{tpu_custom_call.1} parent=11 // pred_check_branch
          %290 = sbr.rel (%p288) target = $region28
        $region27: #{tpu_custom_call.1} parent=11 // pred_region
          _
        $region28: #{tpu_custom_call.1} parent=11 // pred_fallthru
          _
        // Predicated region
        $region29: #{tpu_custom_call.1} parent=11 // pred_check
          %p291 = pneg %p163
        $region30: #{tpu_custom_call.1} parent=11 // pred_check_branch
          %293 = sbr.rel (%p291) target = $region32
        $region31: #{tpu_custom_call.1} parent=11 // pred_region
          %s295 = ssub.s32 4096, 4096
          %296 = vsyncadd [#allocation3], %s295
          %s297 = sshll.u32 [#allocation2], 4
          %s298 = int_to_ptr.vmem [resolvable:$true] %s297
          %303 = dma.hbm_to_vmem [thread:$0]  %s5, 4096, %s298, [#allocation3], 256, 256, 16
        $region32: #{tpu_custom_call.1} parent=11 // pred_fallthru
          _
        // Predicated region
        $region33: #{tpu_custom_call.1} parent=11 // pred_check
          %p304 = pneg %p184
        $region34: #{tpu_custom_call.1} parent=11 // pred_check_branch
          %306 = sbr.rel (%p304) target = $region36
        $region35: #{tpu_custom_call.1} parent=11 // pred_region
          _
        $region36: #{tpu_custom_call.1} parent=11 // pred_fallthru
          _
        // Predicated region
        $region37: #{tpu_custom_call.1} parent=11 // pred_check
          %p307 = pneg %p210
        $region38: #{tpu_custom_call.1} parent=11 // pred_check_branch
          %309 = sbr.rel (%p307) target = $region40
        $region39: #{tpu_custom_call.1} parent=11 // pred_region
          %s310 = smul.u32 5, %s29
          %s312 = ssub.s32 10240, 10240
          %313 = vsyncadd [#allocation6], %s312
          %s314 = smul.addr %s310, 64
          %s315 = scalar_lea.hbm %s7, %s314
          %s316 = sshll.u32 [#allocation5], 4
          %s317 = int_to_ptr.vmem [resolvable:$true] %s316
          %322 = dma.hbm_to_vmem [thread:$0]  %s315, 10240, %s317, [#allocation6], 320, 320, 20
        $region40: #{tpu_custom_call.1} parent=11 // pred_fallthru
          _
        // Predicated region
        $region41: #{tpu_custom_call.1} parent=11 // pred_check
          %p323 = pneg %p236
        $region42: #{tpu_custom_call.1} parent=11 // pred_check_branch
          %325 = sbr.rel (%p323) target = $region44
        $region43: #{tpu_custom_call.1} parent=11 // pred_region
          %s326 = smul.u32 5, %s29
          %p327 = scmp.lt.s32.totalorder %s326, 4
          %s328 = scalar_select %p327, %s326, 4
          %s329 = scalar_lea.vmem %s8, %s328
          %s330 = smul.u32 5, %s29
        $region44: #{tpu_custom_call.1} parent=11 // pred_fallthru
          _
      $region12: #{tpu_custom_call.1} parent=5 // pred_fallthru
        _
      %p331 = scmp.lt.s32.totalorder %s20, 2
      // Predicated region
      $region45: #{tpu_custom_call.1} parent=5 // pred_check
        %p332 = pneg %p331
      $region46: #{tpu_custom_call.1} parent=5 // pred_check_branch
        %334 = sbr.rel (%p332) target = $region48
      $region47: #{tpu_custom_call.1} parent=5 // pred_region
        // Predicated region
        $region49: #{tpu_custom_call.1} parent=47 // pred_check
          %p335 = pneg %p52
        $region50: #{tpu_custom_call.1} parent=47 // pred_check_branch
          %337 = sbr.rel (%p335) target = $region52
        $region51: #{tpu_custom_call.1} parent=47 // pred_region
          %s338 = smul.u32 2, %s28
          %p339 = scmp.lt.s32.totalorder %s338, 3
          %s340 = scalar_select %p339, %s338, 3
          %s341 = smul.addr %s340, 8
          %s342 = scalar_lea.vmem %s0, %s341
          %s343 = smul.u32 2, %s28
        $region52: #{tpu_custom_call.1} parent=47 // pred_fallthru
          _
      $region48: #{tpu_custom_call.1} parent=5 // pred_fallthru
        _
      %p344 = scmp.le.s32.totalorder 1, %s20
      %p345 = scmp.lt.s32.totalorder %s20, 3
      %p346 = pnand %p344, %p345
      %p347 = pneg %p346
      // Predicated region
      $region53: #{tpu_custom_call.1} parent=5 // pred_check
        _
      $region54: #{tpu_custom_call.1} parent=5 // pred_check_branch
        %349 = sbr.rel (%p346) target = $region56
      $region55: #{tpu_custom_call.1} parent=5 // pred_region
        %s350 = ssub.s32 %s20, 1
        // Predicated region
        $region57: #{tpu_custom_call.1} parent=55 // pred_check
          %p351 = pneg %p163
        $region58: #{tpu_custom_call.1} parent=55 // pred_check_branch
          %353 = sbr.rel (%p351) target = $region60
        $region59: #{tpu_custom_call.1} parent=55 // pred_region
          %354 = dma.done [#allocation3], 4096
        $region60: #{tpu_custom_call.1} parent=55 // pred_fallthru
          _
        // Predicated region
        $region61: #{tpu_custom_call.1} parent=55 // pred_check
          %p355 = pneg %p210
        $region62: #{tpu_custom_call.1} parent=55 // pred_check_branch
          %357 = sbr.rel (%p355) target = $region64
        $region63: #{tpu_custom_call.1} parent=55 // pred_region
          %358 = dma.done [#allocation6], 10240
        $region64: #{tpu_custom_call.1} parent=55 // pred_fallthru
          _
        %s359 = smul.u32 2, %s30
        %p360 = scmp.lt.s32.totalorder %s359, 3
        %s361 = scalar_select %p360, %s359, 3
        %s362 = smul.addr %s361, 8
        %s363 = scalar_lea.vmem %s0, %s362
        %p364 = pneg %p58
        %p365 = pneg %p55
        %p366 = pneg %p79
        %p367 = pneg %p76
        %p368 = pneg %p100
        %p369 = pneg %p97
        %p370 = pneg %p121
        %p371 = pneg %p118
        %p372 = pneg %p142
        %p373 = pneg %p139
        %p374 = pneg %p163
        %p375 = pneg %p160
        %p376 = pneg %p184
        %p377 = pneg %p181
        %p378 = pneg %p210
        %p379 = pneg %p207
        %s380 = smul.u32 5, %s29
        %p381 = scmp.lt.s32.totalorder %s380, 4
        %s382 = scalar_select %p381, %s380, 4
        %s383 = scalar_lea.vmem %s8, %s382
        %p384 = pneg %p236
        %p385 = pneg %p233
        %p386 = pneg %p264
        %p387 = pneg %p261
        %s388 = sand.u32 %s251, 1
        %s389 = scalar_lea.sflag [#allocation4], %s388
        %s390 = sand.u32 %s251, 1
        %s391 = smul.addr %s390, 80
        %s392 = scalar_lea.vmem [#allocation7], %s391
        %s393 = smul.u32 2, %s30
        %p394 = scmp.lt.s32.totalorder %s393, 3
        %s395 = scalar_select %p394, %s393, 3
        %s396 = smul.addr %s395, 8
        %s397 = scalar_lea.vmem %s0, %s396
        %s398 = smul.u32 2, %s30
        %s399 = smul.u32 5, %s29
        %s400 = smul.u32 5, %s29
        %p401 = scmp.lt.s32.totalorder %s400, 4
        %s402 = scalar_select %p401, %s400, 4
        %s403 = scalar_lea.vmem %s8, %s402
        %s404 = smul.u32 5, %s29
        %s405 = smul.u32 2, %s30
        %s406 = smul.u32 5, %s29
        %v408 = vld [vmem:[%s397] sm:$0xff]
        %v409 = vld [vmem:[%s397 + $0x8] sm:$0xff]
        %v410 = vld [vmem:[%s1] sm:$0x1]
        %412 = vset.pattern.permute.xlu0 0
        %413 = vperm.xlu0 %412, %v408
        %v414 = vpop.permute.xlu0 %413
        %417 = vset.pattern.permute.xlu0 0
        %418 = vperm.xlu0 %417, %v409
        %v419 = vpop.permute.xlu0 %418
        %v421 = vlaneseq
        %v422 = vshrl.u32 %v421, 7
        %v423 = vsub.s32 0, %v422
        %v424 = vrot.slane %v410, %v423
        %v425 = vmul.f32 %v414, %v424
        %v426 = vmul.f32 %v419, %v424
        %v427 = vld [vmem:[%s1 + $0x1] sm:$0x1]
        %428 = vset.pattern.permute.xlu0 1
        %429 = vperm.xlu0 %428, %v408
        %v430 = vpop.permute.xlu0 %429
        %432 = vset.pattern.permute.xlu0 1
        %433 = vperm.xlu0 %432, %v409
        %v434 = vpop.permute.xlu0 %433
        %v436 = vlaneseq
        %v437 = vshrl.u32 %v436, 7
        %v438 = vsub.s32 0, %v437
        %v439 = vrot.slane %v427, %v438
        %v440 = vmul.f32 %v430, %v439
        %v441 = vmul.f32 %v434, %v439
        %v442 = vadd.f32 %v425, %v440
        %v443 = vadd.f32 %v426, %v441
        %v444 = vld [vmem:[%s2] sm:$0x1]
        %v446 = vlaneseq
        %v447 = vshrl.u32 %v446, 7
        %v448 = vsub.s32 0, %v447
        %v449 = vrot.slane %v444, %v448
        %v451 = vadd.f32 %v442, %v449
        %v452 = vadd.f32 %v443, %v449
        %v453 = vtanh.pop %v451
        %v454 = vtanh.pop %v452
        %v455 = vld [vmem:[%s3] sm:$0xff]
        %v456 = vld [vmem:[%s3 + $0x8] sm:$0xff]
        %v457 = vld [vmem:[%s3 + $0x10] sm:$0xff]
        %v458 = vld [vmem:[%s3 + $0x18] sm:$0xff]
        %v459 = vld [vmem:[%s4] sm:$0x1]
        %v461 = vlaneseq
        %v462 = vshrl.u32 %v461, 7
        %v463 = vsub.s32 0, %v462
        %v464 = vrot.slane %v459, %v463
        %vm466 = vcmask 261120
        %v468 = vsel %vm466, %v453, 0
        %v471 = vsel %vm466, %v454, 0
        %473 = vmatprep.subr.mxu0 0.0
        %474 = vmatpush1.msra.mxu0 %v455
        %475 = vmatprep.subr.mxu0 0.0
        %476 = vmatpush1.msra.mxu0 %v456
        %477 = vmatprep.subr.mxu0 0.0
        %478 = vmatpush1.msra.mxu0 %v457
        %479 = vmatprep.subr.mxu0 0.0
        %480 = vmatpush1.msra.mxu0 %v458
        %481 = vmatprep.subr.mxu0 0.0
        %482 = vmatpush1.msra.mxu0 0.0
        %483 = vmatprep.subr.mxu0 0.0
        %484 = vmatpush1.msra.mxu0 0.0
        %485 = vmatprep.subr.mxu0 0.0
        %486 = vmatpush1.msra.mxu0 0.0
        %487 = vmatprep.subr.mxu0 0.0
        %488 = vmatpush1.msra.mxu0 0.0
        %489 = vmatprep.subr.mxu0 0.0
        %490 = vmatpush1.msra.mxu0 0.0
        %491 = vmatprep.subr.mxu0 0.0
        %492 = vmatpush1.msra.mxu0 0.0
        %493 = vmatprep.subr.mxu0 0.0
        %494 = vmatpush1.msra.mxu0 0.0
        %495 = vmatprep.subr.mxu0 0.0
        %496 = vmatpush1.msra.mxu0 0.0
        %497 = vmatprep.subr.mxu0 0.0
        %498 = vmatpush1.msra.mxu0 0.0
        %499 = vmatprep.subr.mxu0 0.0
        %500 = vmatpush1.msra.mxu0 0.0
        %501 = vmatprep.subr.mxu0 0.0
        %502 = vmatpush1.msra.mxu0 0.0
        %503 = vmatprep.subr.mxu0 0.0
        %504 = vmatpush1.msra.mxu0 0.0
        %505 = vmatprep.subr.mxu0 0.0
        %506 = vmatpush1.msra.mxu0 0.0
        %507 = vmatprep.subr.mxu0 0.0
        %508 = vmatpush1.msra.mxu0 0.0
        %509 = vmatprep.subr.mxu0 0.0
        %510 = vmatpush1.msra.mxu0 0.0
        %511 = vmatprep.subr.mxu0 0.0
        %512 = vmatpush1.msra.mxu0 0.0
        %513 = vmatprep.subr.mxu0 0.0
        %514 = vmatpush1.msra.mxu0 0.0
        %515 = vmatprep.subr.mxu0 0.0
        %516 = vmatpush1.msra.mxu0 0.0
        %517 = vmatprep.subr.mxu0 0.0
        %518 = vmatpush1.msra.mxu0 0.0
        %519 = vmatprep.subr.mxu0 0.0
        %520 = vmatpush1.msra.mxu0 0.0
        %521 = vmatprep.subr.mxu0 0.0
        %522 = vmatpush1.msra.mxu0 0.0
        %523 = vmatprep.subr.mxu0 0.0
        %524 = vmatpush1.msra.mxu0 0.0
        %525 = vmatprep.subr.mxu0 0.0
        %526 = vmatpush1.msra.mxu0 0.0
        %527 = vmatprep.subr.mxu0 0.0
        %528 = vmatpush1.msra.mxu0 0.0
        %529 = vmatprep.subr.mxu0 0.0
        %530 = vmatpush1.msra.mxu0 0.0
        %531 = vmatprep.subr.mxu0 0.0
        %532 = vmatpush1.msra.mxu0 0.0
        %533 = vmatprep.subr.mxu0 0.0
        %534 = vmatpush1.msra.mxu0 0.0
        %535 = vmatprep.subr.mxu0 0.0
        %536 = vmatpush1.msra.mxu0 0.0
        %537 = vmatprep.mubr.f32.mxu0 0.0
        %538 = vmatmul.mubr.f32.gmra.mrb[0].mxu0 %v468
        %v539 = vpop.f32.mrb[0].mxu0
        %v540 = vadd.f32 %v464, %v539
        %v541 = vpop.f32.mrb[0].mxu0
        %542 = vmatprep.mubr.f32.mxu0 0.0
        %543 = vmatmul.mubr.f32.gmra.mrb[0].mxu0 %v471
        %v544 = vpop.f32.mrb[0].mxu0
        %v545 = vadd.f32 %v464, %v544
        %v546 = vpop.f32.mrb[0].mxu0
        %547 = vdwg.mxu0
        %v548 = vtanh.pop %v540
        %v549 = vtanh.pop %v545
        %v550 = vld [vmem:[#allocation2] sm:$0xff]
        %v551 = vld [vmem:[#allocation2 + $0x8] sm:$0xff]
        %v552 = vld [vmem:[#allocation2 + $0x10] sm:$0xff]
        %v553 = vld [vmem:[#allocation2 + $0x18] sm:$0xff]
        %v554 = vld [vmem:[#allocation2 + $0x20] sm:$0xff]
        %v555 = vld [vmem:[#allocation2 + $0x28] sm:$0xff]
        %v556 = vld [vmem:[#allocation2 + $0x30] sm:$0xff]
        %v557 = vld [vmem:[#allocation2 + $0x38] sm:$0xff]
        %v558 = vld [vmem:[#allocation2 + $0x40] sm:$0xff]
        %v559 = vld [vmem:[#allocation2 + $0x48] sm:$0xff]
        %v560 = vld [vmem:[#allocation2 + $0x50] sm:$0xff]
        %v561 = vld [vmem:[#allocation2 + $0x58] sm:$0xff]
        %v562 = vld [vmem:[#allocation2 + $0x60] sm:$0xff]
        %v563 = vld [vmem:[#allocation2 + $0x68] sm:$0xff]
        %v564 = vld [vmem:[#allocation2 + $0x70] sm:$0xff]
        %v565 = vld [vmem:[#allocation2 + $0x78] sm:$0xff]
        %v566 = vld [vmem:[#allocation2 + $0x80] sm:$0xff]
        %v567 = vld [vmem:[#allocation2 + $0x88] sm:$0xff]
        %v568 = vld [vmem:[#allocation2 + $0x90] sm:$0xff]
        %v569 = vld [vmem:[#allocation2 + $0x98] sm:$0xff]
        %v570 = vld [vmem:[#allocation2 + $0xa0] sm:$0xff]
        %v571 = vld [vmem:[#allocation2 + $0xa8] sm:$0xff]
        %v572 = vld [vmem:[#allocation2 + $0xb0] sm:$0xff]
        %v573 = vld [vmem:[#allocation2 + $0xb8] sm:$0xff]
        %v574 = vld [vmem:[#allocation2 + $0xc0] sm:$0xff]
        %v575 = vld [vmem:[#allocation2 + $0xc8] sm:$0xff]
        %v576 = vld [vmem:[#allocation2 + $0xd0] sm:$0xff]
        %v577 = vld [vmem:[#allocation2 + $0xd8] sm:$0xff]
        %v578 = vld [vmem:[#allocation2 + $0xe0] sm:$0xff]
        %v579 = vld [vmem:[#allocation2 + $0xe8] sm:$0xff]
        %v580 = vld [vmem:[#allocation2 + $0xf0] sm:$0xff]
        %v581 = vld [vmem:[#allocation2 + $0xf8] sm:$0xff]
        %v582 = vld [vmem:[%s6] sm:$0x3]
        %v584 = vlaneseq
        %v585 = vshrl.u32 %v584, 7
        %v586 = vsub.s32 0, %v585
        %v587 = vrot.slane %v582, %v586
        %v588 = vlaneseq
        %v589 = vshrl.u32 %v588, 7
        %v590 = vsub.s32 1, %v589
        %v591 = vrot.slane %v582, %v590
        %594 = vmatprep.subr.mxu0 %v551
        %595 = vmatpush1.msra.mxu0 %v550
        %596 = vmatprep.subr.mxu0 %v553
        %597 = vmatpush1.msra.mxu0 %v552
        %598 = vmatprep.subr.mxu0 %v555
        %599 = vmatpush1.msra.mxu0 %v554
        %600 = vmatprep.subr.mxu0 %v557
        %601 = vmatpush1.msra.mxu0 %v556
        %602 = vmatprep.subr.mxu0 %v559
        %603 = vmatpush1.msra.mxu0 %v558
        %604 = vmatprep.subr.mxu0 %v561
        %605 = vmatpush1.msra.mxu0 %v560
        %606 = vmatprep.subr.mxu0 %v563
        %607 = vmatpush1.msra.mxu0 %v562
        %608 = vmatprep.subr.mxu0 %v565
        %609 = vmatpush1.msra.mxu0 %v564
        %610 = vmatprep.subr.mxu0 %v567
        %611 = vmatpush1.msra.mxu0 %v566
        %612 = vmatprep.subr.mxu0 %v569
        %613 = vmatpush1.msra.mxu0 %v568
        %614 = vmatprep.subr.mxu0 %v571
        %615 = vmatpush1.msra.mxu0 %v570
        %616 = vmatprep.subr.mxu0 %v573
        %617 = vmatpush1.msra.mxu0 %v572
        %618 = vmatprep.subr.mxu0 %v575
        %619 = vmatpush1.msra.mxu0 %v574
        %620 = vmatprep.subr.mxu0 %v577
        %621 = vmatpush1.msra.mxu0 %v576
        %622 = vmatprep.subr.mxu0 %v579
        %623 = vmatpush1.msra.mxu0 %v578
        %624 = vmatprep.subr.mxu0 %v581
        %625 = vmatpush1.msra.mxu0 %v580
        %626 = vmatprep.subr.mxu0 0.0
        %627 = vmatpush1.msra.mxu0 0.0
        %628 = vmatprep.subr.mxu0 0.0
        %629 = vmatpush1.msra.mxu0 0.0
        %630 = vmatprep.subr.mxu0 0.0
        %631 = vmatpush1.msra.mxu0 0.0
        %632 = vmatprep.subr.mxu0 0.0
        %633 = vmatpush1.msra.mxu0 0.0
        %634 = vmatprep.subr.mxu0 0.0
        %635 = vmatpush1.msra.mxu0 0.0
        %636 = vmatprep.subr.mxu0 0.0
        %637 = vmatpush1.msra.mxu0 0.0
        %638 = vmatprep.subr.mxu0 0.0
        %639 = vmatpush1.msra.mxu0 0.0
        %640 = vmatprep.subr.mxu0 0.0
        %641 = vmatpush1.msra.mxu0 0.0
        %642 = vmatprep.subr.mxu0 0.0
        %643 = vmatpush1.msra.mxu0 0.0
        %644 = vmatprep.subr.mxu0 0.0
        %645 = vmatpush1.msra.mxu0 0.0
        %646 = vmatprep.subr.mxu0 0.0
        %647 = vmatpush1.msra.mxu0 0.0
        %648 = vmatprep.subr.mxu0 0.0
        %649 = vmatpush1.msra.mxu0 0.0
        %650 = vmatprep.subr.mxu0 0.0
        %651 = vmatpush1.msra.mxu0 0.0
        %652 = vmatprep.subr.mxu0 0.0
        %653 = vmatpush1.msra.mxu0 0.0
        %654 = vmatprep.subr.mxu0 0.0
        %655 = vmatpush1.msra.mxu0 0.0
        %656 = vmatprep.subr.mxu0 0.0
        %657 = vmatpush1.msra.mxu0 0.0
        %658 = vmatprep.mubr.f32.mxu0 0.0
        %659 = vmatmul.mubr.f32.gmra.mrb[0].mxu0 %v548
        %v660 = vpop.f32.mrb[0].mxu0
        %v661 = vadd.f32 %v587, %v660
        %v662 = vpop.f32.mrb[0].mxu0
        %v663 = vadd.f32 %v591, %v662
        %664 = vmatprep.mubr.f32.mxu0 0.0
        %665 = vmatmul.mubr.f32.gmra.mrb[0].mxu0 %v549
        %v666 = vpop.f32.mrb[0].mxu0
        %v667 = vadd.f32 %v587, %v666
        %v668 = vpop.f32.mrb[0].mxu0
        %v669 = vadd.f32 %v591, %v668
        %670 = vdwg.mxu0
        %v671 = vtanh.pop %v661
        %v672 = vtanh.pop %v663
        %v673 = vtanh.pop %v667
        %v674 = vtanh.pop %v669
        %v675 = vpack.c.bf16 %v673, %v671
        %v676 = vpack.c.bf16 %v674, %v672
        %v677 = vld [vmem:[#allocation5] sm:$0xff]
        %v678 = vld [vmem:[#allocation5 + $0x8] sm:$0xff]
        %v679 = vld [vmem:[#allocation5 + $0x10] sm:$0xf]
        %v680 = vld [vmem:[#allocation5 + $0x14] sm:$0xff]
        %v681 = vld [vmem:[#allocation5 + $0x1c] sm:$0xff]
        %v682 = vld [vmem:[#allocation5 + $0x24] sm:$0xf]
        %v683 = vld [vmem:[#allocation5 + $0x28] sm:$0xff]
        %v684 = vld [vmem:[#allocation5 + $0x30] sm:$0xff]
        %v685 = vld [vmem:[#allocation5 + $0x38] sm:$0xf]
        %v686 = vld [vmem:[#allocation5 + $0x3c] sm:$0xff]
        %v687 = vld [vmem:[#allocation5 + $0x44] sm:$0xff]
        %v688 = vld [vmem:[#allocation5 + $0x4c] sm:$0xf]
        %v689 = vld [vmem:[#allocation5 + $0x50] sm:$0xff]
        %v690 = vld [vmem:[#allocation5 + $0x58] sm:$0xff]
        %v691 = vld [vmem:[#allocation5 + $0x60] sm:$0xf]
        %v692 = vld [vmem:[#allocation5 + $0x64] sm:$0xff]
        %v693 = vld [vmem:[#allocation5 + $0x6c] sm:$0xff]
        %v694 = vld [vmem:[#allocation5 + $0x74] sm:$0xf]
        %v695 = vld [vmem:[#allocation5 + $0x78] sm:$0xff]
        %v696 = vld [vmem:[#allocation5 + $0x80] sm:$0xff]
        %v697 = vld [vmem:[#allocation5 + $0x88] sm:$0xf]
        %v698 = vld [vmem:[#allocation5 + $0x8c] sm:$0xff]
        %v699 = vld [vmem:[#allocation5 + $0x94] sm:$0xff]
        %v700 = vld [vmem:[#allocation5 + $0x9c] sm:$0xf]
        %v701 = vld [vmem:[#allocation5 + $0xa0] sm:$0xff]
        %v702 = vld [vmem:[#allocation5 + $0xa8] sm:$0xff]
        %v703 = vld [vmem:[#allocation5 + $0xb0] sm:$0xf]
        %v704 = vld [vmem:[#allocation5 + $0xb4] sm:$0xff]
        %v705 = vld [vmem:[#allocation5 + $0xbc] sm:$0xff]
        %v706 = vld [vmem:[#allocation5 + $0xc4] sm:$0xf]
        %v707 = vld [vmem:[#allocation5 + $0xc8] sm:$0xff]
        %v708 = vld [vmem:[#allocation5 + $0xd0] sm:$0xff]
        %v709 = vld [vmem:[#allocation5 + $0xd8] sm:$0xf]
        %v710 = vld [vmem:[#allocation5 + $0xdc] sm:$0xff]
        %v711 = vld [vmem:[#allocation5 + $0xe4] sm:$0xff]
        %v712 = vld [vmem:[#allocation5 + $0xec] sm:$0xf]
        %v713 = vld [vmem:[#allocation5 + $0xf0] sm:$0xff]
        %v714 = vld [vmem:[#allocation5 + $0xf8] sm:$0xff]
        %v715 = vld [vmem:[#allocation5 + $0x100] sm:$0xf]
        %v716 = vld [vmem:[#allocation5 + $0x104] sm:$0xff]
        %v717 = vld [vmem:[#allocation5 + $0x10c] sm:$0xff]
        %v718 = vld [vmem:[#allocation5 + $0x114] sm:$0xf]
        %v719 = vld [vmem:[#allocation5 + $0x118] sm:$0xff]
        %v720 = vld [vmem:[#allocation5 + $0x120] sm:$0xff]
        %v721 = vld [vmem:[#allocation5 + $0x128] sm:$0xf]
        %v722 = vld [vmem:[#allocation5 + $0x12c] sm:$0xff]
        %v723 = vld [vmem:[#allocation5 + $0x134] sm:$0xff]
        %v724 = vld [vmem:[#allocation5 + $0x13c] sm:$0xf]
        %v725 = vld [vmem:[#allocation5 + $0x140] sm:$0xff]
        %v726 = vld [vmem:[#allocation5 + $0x148] sm:$0xff]
        %v727 = vld [vmem:[#allocation5 + $0x150] sm:$0xf]
        %v728 = vld [vmem:[#allocation5 + $0x154] sm:$0xff]
        %v729 = vld [vmem:[#allocation5 + $0x15c] sm:$0xff]
        %v730 = vld [vmem:[#allocation5 + $0x164] sm:$0xf]
        %v731 = vld [vmem:[#allocation5 + $0x168] sm:$0xff]
        %v732 = vld [vmem:[#allocation5 + $0x170] sm:$0xff]
        %v733 = vld [vmem:[#allocation5 + $0x178] sm:$0xf]
        %v734 = vld [vmem:[#allocation5 + $0x17c] sm:$0xff]
        %v735 = vld [vmem:[#allocation5 + $0x184] sm:$0xff]
        %v736 = vld [vmem:[#allocation5 + $0x18c] sm:$0xf]
        %v737 = vld [vmem:[#allocation5 + $0x190] sm:$0xff]
        %v738 = vld [vmem:[#allocation5 + $0x198] sm:$0xff]
        %v739 = vld [vmem:[#allocation5 + $0x1a0] sm:$0xf]
        %v740 = vld [vmem:[#allocation5 + $0x1a4] sm:$0xff]
        %v741 = vld [vmem:[#allocation5 + $0x1ac] sm:$0xff]
        %v742 = vld [vmem:[#allocation5 + $0x1b4] sm:$0xf]
        %v743 = vld [vmem:[#allocation5 + $0x1b8] sm:$0xff]
        %v744 = vld [vmem:[#allocation5 + $0x1c0] sm:$0xff]
        %v745 = vld [vmem:[#allocation5 + $0x1c8] sm:$0xf]
        %v746 = vld [vmem:[#allocation5 + $0x1cc] sm:$0xff]
        %v747 = vld [vmem:[#allocation5 + $0x1d4] sm:$0xff]
        %v748 = vld [vmem:[#allocation5 + $0x1dc] sm:$0xf]
        %v749 = vld [vmem:[#allocation5 + $0x1e0] sm:$0xff]
        %v750 = vld [vmem:[#allocation5 + $0x1e8] sm:$0xff]
        %v751 = vld [vmem:[#allocation5 + $0x1f0] sm:$0xf]
        %v752 = vld [vmem:[#allocation5 + $0x1f4] sm:$0xff]
        %v753 = vld [vmem:[#allocation5 + $0x1fc] sm:$0xff]
        %v754 = vld [vmem:[#allocation5 + $0x204] sm:$0xf]
        %v755 = vld [vmem:[#allocation5 + $0x208] sm:$0xff]
        %v756 = vld [vmem:[#allocation5 + $0x210] sm:$0xff]
        %v757 = vld [vmem:[#allocation5 + $0x218] sm:$0xf]
        %v758 = vld [vmem:[#allocation5 + $0x21c] sm:$0xff]
        %v759 = vld [vmem:[#allocation5 + $0x224] sm:$0xff]
        %v760 = vld [vmem:[#allocation5 + $0x22c] sm:$0xf]
        %v761 = vld [vmem:[#allocation5 + $0x230] sm:$0xff]
        %v762 = vld [vmem:[#allocation5 + $0x238] sm:$0xff]
        %v763 = vld [vmem:[#allocation5 + $0x240] sm:$0xf]
        %v764 = vld [vmem:[#allocation5 + $0x244] sm:$0xff]
        %v765 = vld [vmem:[#allocation5 + $0x24c] sm:$0xff]
        %v766 = vld [vmem:[#allocation5 + $0x254] sm:$0xf]
        %v767 = vld [vmem:[#allocation5 + $0x258] sm:$0xff]
        %v768 = vld [vmem:[#allocation5 + $0x260] sm:$0xff]
        %v769 = vld [vmem:[#allocation5 + $0x268] sm:$0xf]
        %v770 = vld [vmem:[#allocation5 + $0x26c] sm:$0xff]
        %v771 = vld [vmem:[#allocation5 + $0x274] sm:$0xff]
        %v772 = vld [vmem:[#allocation5 + $0x27c] sm:$0xf]
        %v773 = vld [vmem:[%s403] sm:$0x1f]
        %v775 = vlaneseq
        %v776 = vshrl.u32 %v775, 7
        %v777 = vsub.s32 0, %v776
        %v778 = vrot.slane %v773, %v777
        %v779 = vlaneseq
        %v780 = vshrl.u32 %v779, 7
        %v781 = vsub.s32 1, %v780
        %v782 = vrot.slane %v773, %v781
        %v783 = vlaneseq
        %v784 = vshrl.u32 %v783, 7
        %v785 = vsub.s32 2, %v784
        %v786 = vrot.slane %v773, %v785
        %v787 = vlaneseq
        %v788 = vshrl.u32 %v787, 7
        %v789 = vsub.s32 3, %v788
        %v790 = vrot.slane %v773, %v789
        %v791 = vlaneseq
        %v792 = vshrl.u32 %v791, 7
        %v793 = vsub.s32 4, %v792
        %v794 = vrot.slane %v773, %v793
        %v896 = vunpack.c.l.b16 %v677
        %v897 = vunpack.c.h.b16 %v677
        %v898 = vunpack.c.l.b16 %v678
        %v899 = vunpack.c.h.b16 %v678
        %v900 = vunpack.c.l.b16 %v679
        %v901 = vunpack.c.l.b16 %v680
        %v902 = vunpack.c.h.b16 %v680
        %v903 = vunpack.c.l.b16 %v681
        %v904 = vunpack.c.h.b16 %v681
        %v905 = vunpack.c.l.b16 %v682
        %v906 = vunpack.c.l.b16 %v683
        %v907 = vunpack.c.h.b16 %v683
        %v908 = vunpack.c.l.b16 %v684
        %v909 = vunpack.c.h.b16 %v684
        %v910 = vunpack.c.l.b16 %v685
        %v911 = vunpack.c.l.b16 %v686
        %v912 = vunpack.c.h.b16 %v686
        %v913 = vunpack.c.l.b16 %v687
        %v914 = vunpack.c.h.b16 %v687
        %v915 = vunpack.c.l.b16 %v688
        %v916 = vunpack.c.l.b16 %v689
        %v917 = vunpack.c.h.b16 %v689
        %v918 = vunpack.c.l.b16 %v690
        %v919 = vunpack.c.h.b16 %v690
        %v920 = vunpack.c.l.b16 %v691
        %v921 = vunpack.c.l.b16 %v692
        %v922 = vunpack.c.h.b16 %v692
        %v923 = vunpack.c.l.b16 %v693
        %v924 = vunpack.c.h.b16 %v693
        %v925 = vunpack.c.l.b16 %v694
        %v926 = vunpack.c.l.b16 %v695
        %v927 = vunpack.c.h.b16 %v695
        %v928 = vunpack.c.l.b16 %v696
        %v929 = vunpack.c.h.b16 %v696
        %v930 = vunpack.c.l.b16 %v697
        %v931 = vunpack.c.l.b16 %v698
        %v932 = vunpack.c.h.b16 %v698
        %v933 = vunpack.c.l.b16 %v699
        %v934 = vunpack.c.h.b16 %v699
        %v935 = vunpack.c.l.b16 %v700
        %v936 = vunpack.c.l.b16 %v701
        %v937 = vunpack.c.h.b16 %v701
        %v938 = vunpack.c.l.b16 %v702
        %v939 = vunpack.c.h.b16 %v702
        %v940 = vunpack.c.l.b16 %v703
        %v941 = vunpack.c.l.b16 %v704
        %v942 = vunpack.c.h.b16 %v704
        %v943 = vunpack.c.l.b16 %v705
        %v944 = vunpack.c.h.b16 %v705
        %v945 = vunpack.c.l.b16 %v706
        %v946 = vunpack.c.l.b16 %v707
        %v947 = vunpack.c.h.b16 %v707
        %v948 = vunpack.c.l.b16 %v708
        %v949 = vunpack.c.h.b16 %v708
        %v950 = vunpack.c.l.b16 %v709
        %v951 = vunpack.c.l.b16 %v710
        %v952 = vunpack.c.h.b16 %v710
        %v953 = vunpack.c.l.b16 %v711
        %v954 = vunpack.c.h.b16 %v711
        %v955 = vunpack.c.l.b16 %v712
        %v956 = vunpack.c.l.b16 %v713
        %v957 = vunpack.c.h.b16 %v713
        %v958 = vunpack.c.l.b16 %v714
        %v959 = vunpack.c.h.b16 %v714
        %v960 = vunpack.c.l.b16 %v715
        %v961 = vunpack.c.l.b16 %v716
        %v962 = vunpack.c.h.b16 %v716
        %v963 = vunpack.c.l.b16 %v717
        %v964 = vunpack.c.h.b16 %v717
        %v965 = vunpack.c.l.b16 %v718
        %v966 = vunpack.c.l.b16 %v719
        %v967 = vunpack.c.h.b16 %v719
        %v968 = vunpack.c.l.b16 %v720
        %v969 = vunpack.c.h.b16 %v720
        %v970 = vunpack.c.l.b16 %v721
        %v971 = vunpack.c.l.b16 %v722
        %v972 = vunpack.c.h.b16 %v722
        %v973 = vunpack.c.l.b16 %v723
        %v974 = vunpack.c.h.b16 %v723
        %v975 = vunpack.c.l.b16 %v724
        %v976 = vunpack.c.l.b16 %v725
        %v977 = vunpack.c.h.b16 %v725
        %v978 = vunpack.c.l.b16 %v726
        %v979 = vunpack.c.h.b16 %v726
        %v980 = vunpack.c.l.b16 %v727
        %v981 = vunpack.c.l.b16 %v728
        %v982 = vunpack.c.h.b16 %v728
        %v983 = vunpack.c.l.b16 %v729
        %v984 = vunpack.c.h.b16 %v729
        %v985 = vunpack.c.l.b16 %v730
        %v986 = vunpack.c.l.b16 %v731
        %v987 = vunpack.c.h.b16 %v731
        %v988 = vunpack.c.l.b16 %v732
        %v989 = vunpack.c.h.b16 %v732
        %v990 = vunpack.c.l.b16 %v733
        %v991 = vunpack.c.l.b16 %v734
        %v992 = vunpack.c.h.b16 %v734
        %v993 = vunpack.c.l.b16 %v735
        %v994 = vunpack.c.h.b16 %v735
        %v995 = vunpack.c.l.b16 %v736
        %v996 = vunpack.c.l.b16 %v737
        %v997 = vunpack.c.h.b16 %v737
        %v998 = vunpack.c.l.b16 %v738
        %v999 = vunpack.c.h.b16 %v738
        %v1000 = vunpack.c.l.b16 %v739
        %v1001 = vunpack.c.l.b16 %v740
        %v1002 = vunpack.c.h.b16 %v740
        %v1003 = vunpack.c.l.b16 %v741
        %v1004 = vunpack.c.h.b16 %v741
        %v1005 = vunpack.c.l.b16 %v742
        %v1006 = vunpack.c.l.b16 %v743
        %v1007 = vunpack.c.h.b16 %v743
        %v1008 = vunpack.c.l.b16 %v744
        %v1009 = vunpack.c.h.b16 %v744
        %v1010 = vunpack.c.l.b16 %v745
        %v1011 = vunpack.c.l.b16 %v746
        %v1012 = vunpack.c.h.b16 %v746
        %v1013 = vunpack.c.l.b16 %v747
        %v1014 = vunpack.c.h.b16 %v747
        %v1015 = vunpack.c.l.b16 %v748
        %v1016 = vunpack.c.l.b16 %v749
        %v1017 = vunpack.c.h.b16 %v749
        %v1018 = vunpack.c.l.b16 %v750
        %v1019 = vunpack.c.h.b16 %v750
        %v1020 = vunpack.c.l.b16 %v751
        %v1021 = vunpack.c.l.b16 %v752
        %v1022 = vunpack.c.h.b16 %v752
        %v1023 = vunpack.c.l.b16 %v753
        %v1024 = vunpack.c.h.b16 %v753
        %v1025 = vunpack.c.l.b16 %v754
        %v1026 = vunpack.c.l.b16 %v755
        %v1027 = vunpack.c.h.b16 %v755
        %v1028 = vunpack.c.l.b16 %v756
        %v1029 = vunpack.c.h.b16 %v756
        %v1030 = vunpack.c.l.b16 %v757
        %v1031 = vunpack.c.l.b16 %v758
        %v1032 = vunpack.c.h.b16 %v758
        %v1033 = vunpack.c.l.b16 %v759
        %v1034 = vunpack.c.h.b16 %v759
        %v1035 = vunpack.c.l.b16 %v760
        %v1036 = vunpack.c.l.b16 %v761
        %v1037 = vunpack.c.h.b16 %v761
        %v1038 = vunpack.c.l.b16 %v762
        %v1039 = vunpack.c.h.b16 %v762
        %v1040 = vunpack.c.l.b16 %v763
        %v1041 = vunpack.c.l.b16 %v764
        %v1042 = vunpack.c.h.b16 %v764
        %v1043 = vunpack.c.l.b16 %v765
        %v1044 = vunpack.c.h.b16 %v765
        %v1045 = vunpack.c.l.b16 %v766
        %v1046 = vunpack.c.l.b16 %v767
        %v1047 = vunpack.c.h.b16 %v767
        %v1048 = vunpack.c.l.b16 %v768
        %v1049 = vunpack.c.h.b16 %v768
        %v1050 = vunpack.c.l.b16 %v769
        %v1051 = vunpack.c.l.b16 %v770
        %v1052 = vunpack.c.h.b16 %v770
        %v1053 = vunpack.c.l.b16 %v771
        %v1054 = vunpack.c.h.b16 %v771
        %v1055 = vunpack.c.l.b16 %v772
        %v1056 = vpack.c.b16 %v901, %v896
        %v1057 = vpack.c.b16 %v902, %v897
        %v1058 = vpack.c.b16 %v903, %v898
        %v1059 = vpack.c.b16 %v904, %v899
        %v1060 = vpack.c.b16 %v905, %v900
        %v1061 = vpack.c.b16 %v911, %v906
        %v1062 = vpack.c.b16 %v912, %v907
        %v1063 = vpack.c.b16 %v913, %v908
        %v1064 = vpack.c.b16 %v914, %v909
        %v1065 = vpack.c.b16 %v915, %v910
        %v1066 = vpack.c.b16 %v921, %v916
        %v1067 = vpack.c.b16 %v922, %v917
        %v1068 = vpack.c.b16 %v923, %v918
        %v1069 = vpack.c.b16 %v924, %v919
        %v1070 = vpack.c.b16 %v925, %v920
        %v1071 = vpack.c.b16 %v931, %v926
        %v1072 = vpack.c.b16 %v932, %v927
        %v1073 = vpack.c.b16 %v933, %v928
        %v1074 = vpack.c.b16 %v934, %v929
        %v1075 = vpack.c.b16 %v935, %v930
        %v1076 = vpack.c.b16 %v941, %v936
        %v1077 = vpack.c.b16 %v942, %v937
        %v1078 = vpack.c.b16 %v943, %v938
        %v1079 = vpack.c.b16 %v944, %v939
        %v1080 = vpack.c.b16 %v945, %v940
        %v1081 = vpack.c.b16 %v951, %v946
        %v1082 = vpack.c.b16 %v952, %v947
        %v1083 = vpack.c.b16 %v953, %v948
        %v1084 = vpack.c.b16 %v954, %v949
        %v1085 = vpack.c.b16 %v955, %v950
        %v1086 = vpack.c.b16 %v961, %v956
        %v1087 = vpack.c.b16 %v962, %v957
        %v1088 = vpack.c.b16 %v963, %v958
        %v1089 = vpack.c.b16 %v964, %v959
        %v1090 = vpack.c.b16 %v965, %v960
        %v1091 = vpack.c.b16 %v971, %v966
        %v1092 = vpack.c.b16 %v972, %v967
        %v1093 = vpack.c.b16 %v973, %v968
        %v1094 = vpack.c.b16 %v974, %v969
        %v1095 = vpack.c.b16 %v975, %v970
        %v1096 = vpack.c.b16 %v981, %v976
        %v1097 = vpack.c.b16 %v982, %v977
        %v1098 = vpack.c.b16 %v983, %v978
        %v1099 = vpack.c.b16 %v984, %v979
        %v1100 = vpack.c.b16 %v985, %v980
        %v1101 = vpack.c.b16 %v991, %v986
        %v1102 = vpack.c.b16 %v992, %v987
        %v1103 = vpack.c.b16 %v993, %v988
        %v1104 = vpack.c.b16 %v994, %v989
        %v1105 = vpack.c.b16 %v995, %v990
        %v1106 = vpack.c.b16 %v1001, %v996
        %v1107 = vpack.c.b16 %v1002, %v997
        %v1108 = vpack.c.b16 %v1003, %v998
        %v1109 = vpack.c.b16 %v1004, %v999
        %v1110 = vpack.c.b16 %v1005, %v1000
        %v1111 = vpack.c.b16 %v1011, %v1006
        %v1112 = vpack.c.b16 %v1012, %v1007
        %v1113 = vpack.c.b16 %v1013, %v1008
        %v1114 = vpack.c.b16 %v1014, %v1009
        %v1115 = vpack.c.b16 %v1015, %v1010
        %v1116 = vpack.c.b16 %v1021, %v1016
        %v1117 = vpack.c.b16 %v1022, %v1017
        %v1118 = vpack.c.b16 %v1023, %v1018
        %v1119 = vpack.c.b16 %v1024, %v1019
        %v1120 = vpack.c.b16 %v1025, %v1020
        %v1121 = vpack.c.b16 %v1031, %v1026
        %v1122 = vpack.c.b16 %v1032, %v1027
        %v1123 = vpack.c.b16 %v1033, %v1028
        %v1124 = vpack.c.b16 %v1034, %v1029
        %v1125 = vpack.c.b16 %v1035, %v1030
        %v1126 = vpack.c.b16 %v1041, %v1036
        %v1127 = vpack.c.b16 %v1042, %v1037
        %v1128 = vpack.c.b16 %v1043, %v1038
        %v1129 = vpack.c.b16 %v1044, %v1039
        %v1130 = vpack.c.b16 %v1045, %v1040
        %v1131 = vpack.c.b16 %v1051, %v1046
        %v1132 = vpack.c.b16 %v1052, %v1047
        %v1133 = vpack.c.b16 %v1053, %v1048
        %v1134 = vpack.c.b16 %v1054, %v1049
        %v1135 = vpack.c.b16 %v1055, %v1050
        %1216 = vmatprep.subr.bf16.mxu0 %v1057
        %1217 = vmatpush1.bf16.msra.mxu0 %v1056
        %1218 = vmatprep.subr.bf16.mxu0 %v1062
        %1219 = vmatpush1.bf16.msra.mxu0 %v1061
        %1220 = vmatprep.subr.bf16.mxu0 %v1067
        %1221 = vmatpush1.bf16.msra.mxu0 %v1066
        %1222 = vmatprep.subr.bf16.mxu0 %v1072
        %1223 = vmatpush1.bf16.msra.mxu0 %v1071
        %1224 = vmatprep.subr.bf16.mxu0 %v1077
        %1225 = vmatpush1.bf16.msra.mxu0 %v1076
        %1226 = vmatprep.subr.bf16.mxu0 %v1082
        %1227 = vmatpush1.bf16.msra.mxu0 %v1081
        %1228 = vmatprep.subr.bf16.mxu0 %v1087
        %1229 = vmatpush1.bf16.msra.mxu0 %v1086
        %1230 = vmatprep.subr.bf16.mxu0 %v1092
        %1231 = vmatpush1.bf16.msra.mxu0 %v1091
        %1232 = vmatprep.subr.bf16.mxu0 %v1097
        %1233 = vmatpush1.bf16.msra.mxu0 %v1096
        %1234 = vmatprep.subr.bf16.mxu0 %v1102
        %1235 = vmatpush1.bf16.msra.mxu0 %v1101
        %1236 = vmatprep.subr.bf16.mxu0 %v1107
        %1237 = vmatpush1.bf16.msra.mxu0 %v1106
        %1238 = vmatprep.subr.bf16.mxu0 %v1112
        %1239 = vmatpush1.bf16.msra.mxu0 %v1111
        %1240 = vmatprep.subr.bf16.mxu0 %v1117
        %1241 = vmatpush1.bf16.msra.mxu0 %v1116
        %1242 = vmatprep.subr.bf16.mxu0 %v1122
        %1243 = vmatpush1.bf16.msra.mxu0 %v1121
        %1244 = vmatprep.subr.bf16.mxu0 %v1127
        %1245 = vmatpush1.bf16.msra.mxu0 %v1126
        %1246 = vmatprep.subr.bf16.mxu0 %v1132
        %1247 = vmatpush1.bf16.msra.mxu0 %v1131
        %1248 = vmatprep.mubr.bf16.mxu0 %v676
        %1249 = vmatmul.mubr.bf16.gmra.mrb[0].mxu0 %v675
        %v1250 = vpop.f32.mrb[0].mxu0
        %v1251 = vadd.f32 %v778, %v1250
        %v1252 = vpop.f32.mrb[0].mxu0
        %v1253 = vadd.f32 %v782, %v1252
        %v1254 = vpop.f32.mrb[0].mxu0
        %v1255 = vadd.f32 %v778, %v1254
        %v1256 = vpop.f32.mrb[0].mxu0
        %v1257 = vadd.f32 %v782, %v1256
        %1258 = vdwg.mxu0
        %1259 = vmatprep.subr.bf16.mxu0 %v1059
        %1260 = vmatpush1.bf16.msra.mxu0 %v1058
        %1261 = vmatprep.subr.bf16.mxu0 %v1064
        %1262 = vmatpush1.bf16.msra.mxu0 %v1063
        %1263 = vmatprep.subr.bf16.mxu0 %v1069
        %1264 = vmatpush1.bf16.msra.mxu0 %v1068
        %1265 = vmatprep.subr.bf16.mxu0 %v1074
        %1266 = vmatpush1.bf16.msra.mxu0 %v1073
        %1267 = vmatprep.subr.bf16.mxu0 %v1079
        %1268 = vmatpush1.bf16.msra.mxu0 %v1078
        %1269 = vmatprep.subr.bf16.mxu0 %v1084
        %1270 = vmatpush1.bf16.msra.mxu0 %v1083
        %1271 = vmatprep.subr.bf16.mxu0 %v1089
        %1272 = vmatpush1.bf16.msra.mxu0 %v1088
        %1273 = vmatprep.subr.bf16.mxu0 %v1094
        %1274 = vmatpush1.bf16.msra.mxu0 %v1093
        %1275 = vmatprep.subr.bf16.mxu0 %v1099
        %1276 = vmatpush1.bf16.msra.mxu0 %v1098
        %1277 = vmatprep.subr.bf16.mxu0 %v1104
        %1278 = vmatpush1.bf16.msra.mxu0 %v1103
        %1279 = vmatprep.subr.bf16.mxu0 %v1109
        %1280 = vmatpush1.bf16.msra.mxu0 %v1108
        %1281 = vmatprep.subr.bf16.mxu0 %v1114
        %1282 = vmatpush1.bf16.msra.mxu0 %v1113
        %1283 = vmatprep.subr.bf16.mxu0 %v1119
        %1284 = vmatpush1.bf16.msra.mxu0 %v1118
        %1285 = vmatprep.subr.bf16.mxu0 %v1124
        %1286 = vmatpush1.bf16.msra.mxu0 %v1123
        %1287 = vmatprep.subr.bf16.mxu0 %v1129
        %1288 = vmatpush1.bf16.msra.mxu0 %v1128
        %1289 = vmatprep.subr.bf16.mxu0 %v1134
        %1290 = vmatpush1.bf16.msra.mxu0 %v1133
        %1291 = vmatprep.mubr.bf16.mxu0 %v676
        %1292 = vmatmul.mubr.bf16.gmra.mrb[0].mxu0 %v675
        %v1293 = vpop.f32.mrb[0].mxu0
        %v1294 = vadd.f32 %v786, %v1293
        %v1295 = vpop.f32.mrb[0].mxu0
        %v1296 = vadd.f32 %v790, %v1295
        %v1297 = vpop.f32.mrb[0].mxu0
        %v1298 = vadd.f32 %v786, %v1297
        %v1299 = vpop.f32.mrb[0].mxu0
        %v1300 = vadd.f32 %v790, %v1299
        %1301 = vdwg.mxu0
        %1302 = vmatprep.subr.bf16.mxu0 0
        %1303 = vmatpush1.bf16.msra.mxu0 %v1060
        %1304 = vmatprep.subr.bf16.mxu0 0
        %1305 = vmatpush1.bf16.msra.mxu0 %v1065
        %1306 = vmatprep.subr.bf16.mxu0 0
        %1307 = vmatpush1.bf16.msra.mxu0 %v1070
        %1308 = vmatprep.subr.bf16.mxu0 0
        %1309 = vmatpush1.bf16.msra.mxu0 %v1075
        %1310 = vmatprep.subr.bf16.mxu0 0
        %1311 = vmatpush1.bf16.msra.mxu0 %v1080
        %1312 = vmatprep.subr.bf16.mxu0 0
        %1313 = vmatpush1.bf16.msra.mxu0 %v1085
        %1314 = vmatprep.subr.bf16.mxu0 0
        %1315 = vmatpush1.bf16.msra.mxu0 %v1090
        %1316 = vmatprep.subr.bf16.mxu0 0
        %1317 = vmatpush1.bf16.msra.mxu0 %v1095
        %1318 = vmatprep.subr.bf16.mxu0 0
        %1319 = vmatpush1.bf16.msra.mxu0 %v1100
        %1320 = vmatprep.subr.bf16.mxu0 0
        %1321 = vmatpush1.bf16.msra.mxu0 %v1105
        %1322 = vmatprep.subr.bf16.mxu0 0
        %1323 = vmatpush1.bf16.msra.mxu0 %v1110
        %1324 = vmatprep.subr.bf16.mxu0 0
        %1325 = vmatpush1.bf16.msra.mxu0 %v1115
        %1326 = vmatprep.subr.bf16.mxu0 0
        %1327 = vmatpush1.bf16.msra.mxu0 %v1120
        %1328 = vmatprep.subr.bf16.mxu0 0
        %1329 = vmatpush1.bf16.msra.mxu0 %v1125
        %1330 = vmatprep.subr.bf16.mxu0 0
        %1331 = vmatpush1.bf16.msra.mxu0 %v1130
        %1332 = vmatprep.subr.bf16.mxu0 0
        %1333 = vmatpush1.bf16.msra.mxu0 %v1135
        %1334 = vmatprep.mubr.bf16.mxu0 %v676
        %1335 = vmatmul.mubr.bf16.gmra.mrb[0].mxu0 %v675
        %v1336 = vpop.f32.mrb[0].mxu0
        %v1337 = vadd.f32 %v794, %v1336
        %v1338 = vpop.f32.mrb[0].mxu0
        %v1339 = vpop.f32.mrb[0].mxu0
        %v1340 = vadd.f32 %v794, %v1339
        %v1341 = vpop.f32.mrb[0].mxu0
        %1342 = vdwg.mxu0
        %v1343 = vmul.f32 %v1251, 0.5
        %v1344 = vmul.f32 %v1253, 0.5
        %v1345 = vmul.f32 %v1294, 0.5
        %v1346 = vmul.f32 %v1296, 0.5
        %v1347 = vmul.f32 %v1337, 0.5
        %v1348 = vmul.f32 %v1255, 0.5
        %v1349 = vmul.f32 %v1257, 0.5
        %v1350 = vmul.f32 %v1298, 0.5
        %v1351 = vmul.f32 %v1300, 0.5
        %v1352 = vmul.f32 %v1340, 0.5
        %v1353 = vtanh.pop %v1343
        %v1354 = vtanh.pop %v1344
        %v1355 = vtanh.pop %v1345
        %v1356 = vtanh.pop %v1346
        %v1357 = vtanh.pop %v1347
        %v1358 = vtanh.pop %v1348
        %v1359 = vtanh.pop %v1349
        %v1360 = vtanh.pop %v1350
        %v1361 = vtanh.pop %v1351
        %v1362 = vtanh.pop %v1352
        %v1363 = vmul.f32 %v1353, 0.5
        %v1364 = vmul.f32 %v1354, 0.5
        %v1365 = vmul.f32 %v1355, 0.5
        %v1366 = vmul.f32 %v1356, 0.5
        %v1367 = vmul.f32 %v1357, 0.5
        %v1368 = vmul.f32 %v1358, 0.5
        %v1369 = vmul.f32 %v1359, 0.5
        %v1370 = vmul.f32 %v1360, 0.5
        %v1371 = vmul.f32 %v1361, 0.5
        %v1372 = vmul.f32 %v1362, 0.5
        %v1373 = vadd.f32 %v1363, 0.5
        %v1374 = vadd.f32 %v1364, 0.5
        %v1375 = vadd.f32 %v1365, 0.5
        %v1376 = vadd.f32 %v1366, 0.5
        %v1377 = vadd.f32 %v1367, 0.5
        %v1378 = vadd.f32 %v1368, 0.5
        %v1379 = vadd.f32 %v1369, 0.5
        %v1380 = vadd.f32 %v1370, 0.5
        %v1381 = vadd.f32 %v1371, 0.5
        %v1382 = vadd.f32 %v1372, 0.5
        %1383 = vst [vmem:[%s392] sm:$0xff] %v1373
        %1384 = vst [vmem:[%s392 + $0x8] sm:$0xff] %v1374
        %1385 = vst [vmem:[%s392 + $0x10] sm:$0xff] %v1375
        %1386 = vst [vmem:[%s392 + $0x18] sm:$0xff] %v1376
        %1387 = vst [vmem:[%s392 + $0x20] sm:$0xff] %v1377
        %1388 = vst [vmem:[%s392 + $0x28] sm:$0xff] %v1378
        %1389 = vst [vmem:[%s392 + $0x30] sm:$0xff] %v1379
        %1390 = vst [vmem:[%s392 + $0x38] sm:$0xff] %v1380
        %1391 = vst [vmem:[%s392 + $0x40] sm:$0xff] %v1381
        %1392 = vst [vmem:[%s392 + $0x48] sm:$0xff] %v1382
        %s1393 = sand.u32 %s251, 1
        %s1394 = scalar_lea.sflag [#allocation4], %s1393
        %s1395 = sand.u32 %s251, 1
        %s1396 = smul.addr %s1395, 80
        %s1397 = scalar_lea.vmem [#allocation7], %s1396
        // Predicated region
        $region65: #{tpu_custom_call.1} parent=55 // pred_check
          %p1398 = pneg %p261
        $region66: #{tpu_custom_call.1} parent=55 // pred_check_branch
          %1400 = sbr.rel (%p1398) target = $region68
        $region67: #{tpu_custom_call.1} parent=55 // pred_region
          %s1401 = smul.u32 2, %s30
          %s1402 = smul.u32 5, %s29
          %s1404 = ssub.s32 1280, 1280
          %1405 = vsyncadd %s1394, %s1404
          %s1406 = smul.addr %s1401, 5
          %s1407 = sadd.s32 %s1402, %s1406
          %s1408 = smul.addr %s1407, 128
          %s1409 = scalar_lea.hbm %s9, %s1408
          %s1410 = sshll.u32 %s1397, 4
          %s1411 = int_to_ptr.vmem [resolvable:$true] %s1410
          %1416 = dma.vmem_to_hbm [thread:$0]  %s1411, 1280, %s1409, %s1394, 640, 640, 40
        $region68: #{tpu_custom_call.1} parent=55 // pred_fallthru
          _
      $region56: #{tpu_custom_call.1} parent=5 // pred_fallthru
        _
      %p1417 = scmp.le.s32.totalorder 2, %s20
      // Predicated region
      $region69: #{tpu_custom_call.1} parent=5 // pred_check
        %p1418 = pneg %p1417
      $region70: #{tpu_custom_call.1} parent=5 // pred_check_branch
        %1420 = sbr.rel (%p1418) target = $region72
      $region71: #{tpu_custom_call.1} parent=5 // pred_region
        %s1421 = ssub.s32 %s20, 2
        // Predicated region
        $region73: #{tpu_custom_call.1} parent=71 // pred_check
          %p1422 = pneg %p267
        $region74: #{tpu_custom_call.1} parent=71 // pred_check_branch
          %1424 = sbr.rel (%p1422) target = $region76
        $region75: #{tpu_custom_call.1} parent=71 // pred_region
          %s1425 = sand.u32 %s252, 1
          %s1426 = scalar_lea.sflag [#allocation4], %s1425
          %s1427 = sand.u32 %s252, 1
          %s1428 = smul.addr %s1427, 80
          %s1429 = scalar_lea.vmem [#allocation7], %s1428
          %1430 = dma.done %s1426, 1280
        $region76: #{tpu_custom_call.1} parent=71 // pred_fallthru
          _
      $region72: #{tpu_custom_call.1} parent=5 // pred_fallthru
        _
    $region6: #{tpu_custom_call.1} parent=1 // loop_footer
      %s24 = sadd.s32 1, %s20
    $region7: #{tpu_custom_call.1} parent=1 // loop_footer_branch
      %19 = sbr.rel target = $region3
    $region8: #{tpu_custom_call.1} parent=1 // loop_exit
      _
    %1431 = vsyncpa [#allocation3], 1
    %s1432 = scalar_lea.sflag [#allocation3], 1
    %1433 = vsyncpa %s1432, 1
    %1434 = vsyncpa [#allocation6], 1
    %1435 = vsyncpa [#allocation4], 1
    %s1436 = scalar_lea.sflag [#allocation4], 1
    %1437 = vsyncpa %s1436, 1

</llo_original>
